<compile_context>
chip_gen: v5e
topology: v5e:2x2
jax: 0.10.0
libtpu: 0.0.40
codegen_flags: <defaults>
</compile_context>

<pallas_src>
import functools
import math

import jax
import jax.numpy as jnp
import numpy as np
from jax.experimental import pallas as pl
from jax.experimental.pallas import tpu as pltpu

_VMEM_LIMIT = 32 * 1024 * 1024


# --------------------------- fast path (lane-flattened) ----------------------------

def _copy_kernel(x_ref, o_ref):
    o_ref[...] = x_ref[...]


def _pick_lane_tile(width, start, itemsize, max_block_bytes=1 << 20):
    """Largest multiple-of-128 tile T with T | width, T | start (start may be 0),
    keeping one (1, 1, T) block no larger than max_block_bytes."""
    g = math.gcd(width, start) if start else width  # multiple of 128 on the fast path
    m = g // 128
    cap = max(1, max_block_bytes // (128 * itemsize))
    for d in range(min(m, cap), 0, -1):
        if m % d == 0:
            return 128 * d
    return 128


def _copy_cols(x3, start, width, itemsize):
    """Copy columns [start, start+width) of x3 (N, 1, L) into a new (N, 1, width) array."""
    n = x3.shape[0]
    tile = _pick_lane_tile(width, start, itemsize)
    start_blk = start // tile  # static Python int; tile divides start by construction
    return pl.pallas_call(
        _copy_kernel,
        out_shape=jax.ShapeDtypeStruct((n, 1, width), x3.dtype),
        grid=(n, width // tile),
        in_specs=[pl.BlockSpec((1, 1, tile), lambda b, t: (b, 0, t + start_blk))],
        out_specs=pl.BlockSpec((1, 1, tile), lambda b, t: (b, 0, t)),
        compiler_params=pltpu.CompilerParams(
            dimension_semantics=("parallel", "parallel"),
            vmem_limit_bytes=_VMEM_LIMIT,
        ),
    )(x3)


# ------------------------ fallback (channel-sublane split) -------------------------

def _split_kernel(x_ref, o1_ref, o2_ref, *, c1, c2):
    # x_ref : (1, C, T) tile of the flattened (N, C, H*W) input
    # o1_ref: (1, c1, T), o2_ref: (1, c2, T)
    o1_ref[...] = x_ref[:, pl.ds(0, c1), :]
    o2_ref[...] = x_ref[:, pl.ds(c1, c2), :]


def _pick_spatial_tile(hw, channels, itemsize):
    """Largest lane-dense tile (multiple of 128) dividing H*W that keeps one
    (1, C, tile) input block under ~2 MiB."""
    budget_elems = (2 << 20) // max(itemsize * max(channels, 1), 1)
    for cand in (2048, 1024, 512, 256, 128):
        if cand <= budget_elems and hw % cand == 0:
            return cand
    return hw  # odd / small spatial extent: full last dim is always legal


def _split_fallback(x, c1, c2):
    n, ch, h, w = x.shape
    hw = h * w
    tile = _pick_spatial_tile(hw, ch, jnp.dtype(x.dtype).itemsize)
    x3 = x.reshape(n, ch, hw)  # free reshape; H*W becomes the lane axis
    kern = functools.partial(_split_kernel, c1=c1, c2=c2)
    out1, out2 = pl.pallas_call(
        kern,
        out_shape=(
            jax.ShapeDtypeStruct((n, c1, hw), x.dtype),
            jax.ShapeDtypeStruct((n, c2, hw), x.dtype),
        ),
        grid=(n, hw // tile),
        in_specs=[pl.BlockSpec((1, ch, tile), lambda b, t: (b, 0, t))],
        out_specs=(
            pl.BlockSpec((1, c1, tile), lambda b, t: (b, 0, t)),
            pl.BlockSpec((1, c2, tile), lambda b, t: (b, 0, t)),
        ),
        compiler_params=pltpu.CompilerParams(
            dimension_semantics=("parallel", "parallel"),
            vmem_limit_bytes=_VMEM_LIMIT,
        ),
    )(x3)
    return out1.reshape(n, c1, h, w), out2.reshape(n, c2, h, w)


# ----------------------------------- public API ------------------------------------

def split_block_forward(x, ratio=0.5):
    """Pallas implementation of SplitBlock.forward.

    x: (N, C, H, W) -> (x[:, :c, :, :], x[:, c:, :, :]) with c = int(C * ratio).
    """
    n, ch, h, w = x.shape
    c1 = int(ch * ratio)
    c2 = ch - c1
    if c1 == 0 or c2 == 0:
        # Degenerate split: one half is empty; nothing for a kernel to do.
        return x[:, :c1, :, :], x[:, c1:, :, :]

    hw = h * w
    c1l, c2l = c1 * hw, c2 * hw
    itemsize = jnp.dtype(x.dtype).itemsize

    if c1l % 128 == 0 and c2l % 128 == 0:
        # Fast path: both outputs are 128-lane-aligned contiguous column ranges of
        # the per-batch flattened row -> two maximally contiguous lane-dense copies.
        x3 = x.reshape(n, 1, ch * hw)
        out1 = _copy_cols(x3, 0, c1l, itemsize)
        out2 = _copy_cols(x3, c1l, c2l, itemsize)
        return out1.reshape(n, c1, h, w), out2.reshape(n, c2, h, w)

    return _split_fallback(x, c1, c2)


# ----------------------------------------------------------------------------
if __name__ == "__main__":
    key = jax.random.PRNGKey(0)

    def _check(k, shape, ratio):
        x = jax.random.normal(k, shape, jnp.float32)
        o1, o2 = jax.block_until_ready(split_block_forward(x, ratio=ratio))
        c = int(shape[1] * ratio)
        np.testing.assert_array_equal(np.asarray(o1), np.asarray(x[:, :c, :, :]))
        np.testing.assert_array_equal(np.asarray(o2), np.asarray(x[:, c:, :, :]))
        assert o1.shape == (shape[0], c, shape[2], shape[3])
        assert o2.shape == (shape[0], shape[1] - c, shape[2], shape[3])

    k0, k1, k2 = jax.random.split(key, 3)
    _check(k0, (2, 4, 16, 16), 0.5)   # fast path: 128-aligned split, equal halves
    _check(k1, (2, 8, 16, 16), 0.25)  # fast path: unequal halves
    _check(k2, (2, 4, 12, 12), 0.5)   # fallback path: boundary not 128-aligned

    print("KERNEL_OK")
</pallas_src>

<mosaic_0001>
module attributes {stable_mosaic.version = 11 : i64} {
  func.func @_copy_kernel(%arg0: i32, %arg1: i32, %arg2: memref<1x1x512xf32, #tpu.memory_space<vmem>>, %arg3: memref<1x1x512xf32, #tpu.memory_space<vmem>>) attributes {dimension_semantics = [#tpu.dimension_semantics<parallel>, #tpu.dimension_semantics<parallel>], iteration_bounds = array<i64: 2, 1>, scalar_prefetch = 0 : i64, scratch_operands = 0 : i64, tpu.core_type = #tpu.core_type<tc>, window_params = [{transform_indices = @transform_0, window_bounds = array<i64: 1, 1, 512>}, {transform_indices = @transform_1, window_bounds = array<i64: 1, 1, 512>}]} {
    %c0 = arith.constant 0 : index
    %c0_0 = arith.constant 0 : index
    %c0_1 = arith.constant 0 : index
    %0 = vector.load %arg2[%c0, %c0_0, %c0_1] : memref<1x1x512xf32, #tpu.memory_space<vmem>>, vector<1x1x512xf32>
    %c0_2 = arith.constant 0 : index
    %c0_3 = arith.constant 0 : index
    %c0_4 = arith.constant 0 : index
    %1 = vector.load %arg3[%c0_2, %c0_3, %c0_4] : memref<1x1x512xf32, #tpu.memory_space<vmem>>, vector<1x1x512xf32>
    tpu.vector_store %arg3[%c0_2, %c0_3, %c0_4], %0 {strides = array<i32>} : memref<1x1x512xf32, #tpu.memory_space<vmem>>, vector<1x1x512xf32>,
    return
  }
  func.func @transform_0(%arg0: i32, %arg1: i32) -> (i32, i32, i32) {
    %c0_i32 = arith.constant 0 : i32
    %0 = arith.addi %arg1, %c0_i32 : i32
    %c0_i32_0 = arith.constant 0 : i32
    %c0_i32_1 = arith.constant 0 : i32
    return %arg0, %c0_i32_0, %0 : i32, i32, i32
  }
  func.func @transform_1(%arg0: i32, %arg1: i32) -> (i32, i32, i32) {
    %c0_i32 = arith.constant 0 : i32
    %c0_i32_0 = arith.constant 0 : i32
    return %arg0, %c0_i32, %arg1 : i32, i32, i32
  }
}

</mosaic_0001>

<llo_original>
// kernel: tpu_custom_call.1
$region0: #{tpu_custom_call.1}
  #allocation0 [shape = 'u32[]', space=smem, size = 0x4, offset = 0x4, fixed_abs, tag = 'smem constant byte address 0x4 - core index']
  #allocation1 [shape = 'u32[72,128]{1,0:T(1,128)}', space=vmem, size = 0x9000, scoped, tag = 'internal scratch']
  %s0 = inlined_call_operand.hbm [shape: f32[2,1,1024], index: 0, kind: input, shape index: {}]
  %s1 = inlined_call_operand.hbm [shape: f32[2,1,512], index: 1, kind: output, shape index: {}]
  %s2 = sld [smem:[#allocation0]]
  $region41: #{tpu_custom_call.1} parent=0
    _
  %s4 = ssub.s32 1, %s2
  %s5 = scalar_select 0, %s4, %s2
  $region1: #{tpu_custom_call.1} parent=0
    #allocation2 [shape = 'u8[4096]{0}', space=vmem, size = 0x1000, scoped, tag = 'input window, operand 0']
    #allocation3 [shape = 's32[2]{0}', space=sflag, size = 0x8, scoped, tag = 'scoped memory for tpu_custom_call.1']
    #allocation4 [shape = 's32[2]{0}', space=sflag, size = 0x8, scoped, tag = 'scoped memory for tpu_custom_call.1']
    #allocation5 [shape = 'u8[4096]{0}', space=vmem, size = 0x1000, scoped, tag = 'output window, operand 0']
    %6 = vsyncpa [#allocation3], 0
    %s7 = scalar_lea.sflag [#allocation3], 1
    %8 = vsyncpa %s7, 0
    %9 = vsyncpa [#allocation4], 0
    %s10 = scalar_lea.sflag [#allocation4], 1
    %11 = vsyncpa %s10, 0
    loop: start=0, step=1, limit=4
    $region2: #{tpu_custom_call.1} parent=1 // loop_pre_header
      _
    $region3: #{tpu_custom_call.1} parent=1 // loop_header
      %s13 = sphi 0, %s17
      %p14 = scmp.ge.s32.totalorder %s13, 4
      %s20 = sphi 0, %s32
      %s21 = sphi 0, %s28
      %s22 = sphi 0, %s20
      %s23 = sphi 0, %s21
      %s24 = sphi 0, %s22
      %s25 = sphi 0, %s23
      %s37 = sphi 0, %s39
      %s40 = sphi 0, %s37
      %s41 = sphi 0, %s40
      %s57 = sphi 0, %s41
      %s65 = sphi 0, %s67
      %s68 = sphi 0, %s65
      %s69 = sphi 0, %s68
      %s85 = sphi 0, %s69
    $region4: #{tpu_custom_call.1} parent=1 // loop_header_branch
      %16 = sbr.rel (%p14) target = $region8
    $region5: #{tpu_custom_call.1} parent=1 // loop_body
      %s18 = ssub.s32 %s13, 1
      %s19 = ssub.s32 %s13, 2
      %s26 = sadd.s32 1, %s21
      %p27 = scmp.ge.s32.totalorder %s26, 1
      %s28 = scalar_select %p27, 0, %s26
      %s29 = sadd.s32 1, %s20
      %s30 = scalar_select %p27, %s29, %s20
      %p31 = scmp.ge.s32.totalorder %s30, 2
      %s32 = scalar_select %p31, 0, %s30
      %s33 = ssub.s32 %s20, %s32
      %s34 = ssub.s32 %s21, %s28
      %s35 = sor.u32 %s33, %s34
      %p36 = scmp.eq.s32.totalorder %s35, 0
      %s38 = sadd.s32 %s37, 1
      %s39 = scalar_select %p36, %s37, %s38
      %p42 = pneg %p36
      %p43 = scmp.eq.s32.totalorder %s13, 1
      %p44 = por %p42, %p43
      %p45 = scmp.ne.s32.totalorder %s37, %s40
      %p46 = scmp.eq.s32.totalorder %s13, 0
      %p47 = por %p45, %p46
      %p48 = scmp.ne.s32.totalorder %s37, %s40
      %p49 = scmp.eq.s32.totalorder %s18, 1
      %p50 = por %p48, %p49
      %p51 = scmp.ne.s32.totalorder %s40, %s41
      %p52 = scmp.eq.s32.totalorder %s18, 0
      %p53 = por %p51, %p52
      %p54 = scmp.ne.s32.totalorder %s40, %s41
      %p55 = scmp.eq.s32.totalorder %s19, 1
      %p56 = por %p54, %p55
      %p58 = scmp.ne.s32.totalorder %s41, %s57
      %p59 = scmp.eq.s32.totalorder %s19, 0
      %p60 = por %p58, %p59
      %s61 = ssub.s32 %s20, %s32
      %s62 = ssub.s32 %s21, %s28
      %s63 = sor.u32 %s61, %s62
      %p64 = scmp.eq.s32.totalorder %s63, 0
      %s66 = sadd.s32 %s65, 1
      %s67 = scalar_select %p64, %s65, %s66
      %p70 = pneg %p64
      %p71 = scmp.eq.s32.totalorder %s13, 1
      %p72 = por %p70, %p71
      %p73 = scmp.ne.s32.totalorder %s65, %s68
      %p74 = scmp.eq.s32.totalorder %s13, 0
      %p75 = por %p73, %p74
      %p76 = scmp.ne.s32.totalorder %s65, %s68
      %p77 = scmp.eq.s32.totalorder %s18, 1
      %p78 = por %p76, %p77
      %p79 = scmp.ne.s32.totalorder %s68, %s69
      %p80 = scmp.eq.s32.totalorder %s18, 0
      %p81 = por %p79, %p80
      %p82 = scmp.ne.s32.totalorder %s68, %s69
      %p83 = scmp.eq.s32.totalorder %s19, 1
      %p84 = por %p82, %p83
      %p86 = scmp.ne.s32.totalorder %s69, %s85
      %p87 = scmp.eq.s32.totalorder %s19, 0
      %p88 = por %p86, %p87
      %p89 = scmp.le.s32.totalorder 1, %s13
      %p90 = scmp.lt.s32.totalorder %s13, 3
      %p91 = pnand %p89, %p90
      %p92 = pneg %p91
      // Predicated region
      $region9: #{tpu_custom_call.1} parent=5 // pred_check
        _
      $region10: #{tpu_custom_call.1} parent=5 // pred_check_branch
        %94 = sbr.rel (%p91) target = $region12
      $region11: #{tpu_custom_call.1} parent=5 // pred_region
        %s95 = ssub.s32 %s13, 1
      $region12: #{tpu_custom_call.1} parent=5 // pred_fallthru
        _
      %p96 = scmp.lt.s32.totalorder %s13, 2
      // Predicated region
      $region13: #{tpu_custom_call.1} parent=5 // pred_check
        %p97 = pneg %p96
      $region14: #{tpu_custom_call.1} parent=5 // pred_check_branch
        %99 = sbr.rel (%p97) target = $region16
      $region15: #{tpu_custom_call.1} parent=5 // pred_region
        // Predicated region
        $region17: #{tpu_custom_call.1} parent=15 // pred_check
          %p100 = pneg %p47
        $region18: #{tpu_custom_call.1} parent=15 // pred_check_branch
          %102 = sbr.rel (%p100) target = $region20
        $region19: #{tpu_custom_call.1} parent=15 // pred_region
          %s103 = sand.u32 %s37, 1
          %s104 = scalar_lea.sflag [#allocation3], %s103
          %s105 = sand.u32 %s37, 1
          %s106 = smul.addr %s105, 4
          %s107 = scalar_lea.vmem [#allocation2], %s106
          %s108 = smul.u32 4, %s21
          %110 = vsyncadd %s104, 0
          %s111 = smul.addr %s20, 8
          %s112 = sadd.s32 %s108, %s111
          %s113 = scalar_lea.hbm %s0, %s112
          %s115 = sshll.u32 %s113, 4
          %s116 = int_to_ptr.hbm [resolvable:$true] %s115
          %s117 = sshll.u32 %s107, 4
          %s118 = int_to_ptr.vmem [resolvable:$true] %s117
          %120 = dma.hbm_to_vmem [thread:$0]  %s116, 64, %s118, %s104
        $region20: #{tpu_custom_call.1} parent=15 // pred_fallthru
          _
      $region16: #{tpu_custom_call.1} parent=5 // pred_fallthru
        _
      %p121 = scmp.le.s32.totalorder 1, %s13
      %p122 = scmp.lt.s32.totalorder %s13, 3
      %p123 = pnand %p121, %p122
      %p124 = pneg %p123
      // Predicated region
      $region21: #{tpu_custom_call.1} parent=5 // pred_check
        _
      $region22: #{tpu_custom_call.1} parent=5 // pred_check_branch
        %126 = sbr.rel (%p123) target = $region24
      $region23: #{tpu_custom_call.1} parent=5 // pred_region
        %s127 = ssub.s32 %s13, 1
        %s128 = sand.u32 %s40, 1
        %s129 = scalar_lea.sflag [#allocation3], %s128
        %s130 = sand.u32 %s40, 1
        %s131 = smul.addr %s130, 4
        %s132 = scalar_lea.vmem [#allocation2], %s131
        // Predicated region
        $region25: #{tpu_custom_call.1} parent=23 // pred_check
          %p133 = pneg %p53
        $region26: #{tpu_custom_call.1} parent=23 // pred_check_branch
          %135 = sbr.rel (%p133) target = $region28
        $region27: #{tpu_custom_call.1} parent=23 // pred_region
          %137 = dma.done %s129, 64
        $region28: #{tpu_custom_call.1} parent=23 // pred_fallthru
          _
        %s138 = sand.u32 %s40, 1
        %s139 = scalar_lea.sflag [#allocation3], %s138
        %s140 = sand.u32 %s40, 1
        %s141 = smul.addr %s140, 4
        %s142 = scalar_lea.vmem [#allocation2], %s141
        %p143 = pneg %p53
        %p144 = pneg %p50
        %p145 = pneg %p81
        %p146 = pneg %p78
        %s147 = sand.u32 %s68, 1
        %s148 = scalar_lea.sflag [#allocation4], %s147
        %s149 = sand.u32 %s68, 1
        %s150 = smul.addr %s149, 4
        %s151 = scalar_lea.vmem [#allocation5], %s150
        %s152 = smul.u32 4, %s23
        %s153 = smul.u32 4, %s23
        %v154 = vld [vmem:[%s132] sm:$0xf]
        %v155 = vlaneseq
        %vm156 = vcmp.ge.s32.totalorder %v155, 0
        %vm157 = vcmp.lt.s32.totalorder %v155, 512
        %vm158 = vmand %vm156, %vm157
        %159 = vst.msk [vmem:[%s151] sm:$0xf] %vm158, %v154
        %s160 = sand.u32 %s68, 1
        %s161 = scalar_lea.sflag [#allocation4], %s160
        %s162 = sand.u32 %s68, 1
        %s163 = smul.addr %s162, 4
        %s164 = scalar_lea.vmem [#allocation5], %s163
        // Predicated region
        $region29: #{tpu_custom_call.1} parent=23 // pred_check
          %p165 = pneg %p78
        $region30: #{tpu_custom_call.1} parent=23 // pred_check_branch
          %167 = sbr.rel (%p165) target = $region32
        $region31: #{tpu_custom_call.1} parent=23 // pred_region
          %s168 = smul.u32 4, %s23
          %170 = vsyncadd %s161, 0
          %s171 = smul.addr %s22, 4
          %s172 = sadd.s32 %s168, %s171
          %s173 = scalar_lea.hbm %s1, %s172
          %s175 = sshll.u32 %s164, 4
          %s176 = int_to_ptr.vmem [resolvable:$true] %s175
          %s177 = sshll.u32 %s173, 4
          %s178 = int_to_ptr.hbm [resolvable:$true] %s177
          %180 = dma.vmem_to_hbm [thread:$0]  %s176, 64, %s178, %s161
        $region32: #{tpu_custom_call.1} parent=23 // pred_fallthru
          _
      $region24: #{tpu_custom_call.1} parent=5 // pred_fallthru
        _
      %p181 = scmp.le.s32.totalorder 2, %s13
      // Predicated region
      $region33: #{tpu_custom_call.1} parent=5 // pred_check
        %p182 = pneg %p181
      $region34: #{tpu_custom_call.1} parent=5 // pred_check_branch
        %184 = sbr.rel (%p182) target = $region36
      $region35: #{tpu_custom_call.1} parent=5 // pred_region
        %s185 = ssub.s32 %s13, 2
        // Predicated region
        $region37: #{tpu_custom_call.1} parent=35 // pred_check
          %p186 = pneg %p84
        $region38: #{tpu_custom_call.1} parent=35 // pred_check_branch
          %188 = sbr.rel (%p186) target = $region40
        $region39: #{tpu_custom_call.1} parent=35 // pred_region
          %s189 = sand.u32 %s69, 1
          %s190 = scalar_lea.sflag [#allocation4], %s189
          %s191 = sand.u32 %s69, 1
          %s192 = smul.addr %s191, 4
          %s193 = scalar_lea.vmem [#allocation5], %s192
          %195 = dma.done %s190, 64
        $region40: #{tpu_custom_call.1} parent=35 // pred_fallthru
          _
      $region36: #{tpu_custom_call.1} parent=5 // pred_fallthru
        _
    $region6: #{tpu_custom_call.1} parent=1 // loop_footer
      %s17 = sadd.s32 1, %s13
    $region7: #{tpu_custom_call.1} parent=1 // loop_footer_branch
      %12 = sbr.rel target = $region3
    $region8: #{tpu_custom_call.1} parent=1 // loop_exit
      _
    %196 = vsyncpa [#allocation3], 1
    %s197 = scalar_lea.sflag [#allocation3], 1
    %198 = vsyncpa %s197, 1
    %199 = vsyncpa [#allocation4], 1
    %s200 = scalar_lea.sflag [#allocation4], 1
    %201 = vsyncpa %s200, 1

</llo_original>
